<compile_context>
chip_gen: v6e
topology: v6e:2x2x1
jax: 0.10.0
libtpu: 0.0.40
codegen_flags: <defaults>
</compile_context>

<pallas_src>
import jax
import jax.numpy as jnp
from jax import lax
from jax.experimental import pallas as pl
from jax.experimental.pallas import tpu as pltpu


def _embeddings_kernel(patch_ref, w_ref, pos_ref, out_ref):
    # patch_ref: (1, tile_p, Kin)  bf16 flattened patches for this tile
    # w_ref    : (Kin, E)          bf16 flattened Conv3d weight (lane-dense)
    # pos_ref  : (1, tile_p, E)    f32  position embeddings + conv bias
    # out_ref  : (1, tile_p, E)    f32
    acc = jnp.dot(patch_ref[0], w_ref[...], preferred_element_type=jnp.float32)
    out_ref[0] = (acc + pos_ref[0]).astype(out_ref.dtype)


def _round_up(x, m):
    return ((x + m - 1) // m) * m


def _pick_patch_tile(n_patches, kin, e, *, budget_bytes=20 * 1024 * 1024,
                     cap=2048):
    """Largest tile_p (multiple of 8) whose double-buffered streamed blocks fit
    the VMEM budget, chosen to minimize padding of the patch axis."""
    def step_bytes(t):
        # patches (bf16) + pos (f32) + out (f32), each double-buffered.
        return 2 * (t * kin * 2 + t * e * 4 + t * e * 4)

    t_cap = cap
    while t_cap > 8 and step_bytes(t_cap) > budget_bytes:
        t_cap -= 8
    t_cap = max(t_cap, 8)

    if n_patches <= t_cap:
        return _round_up(n_patches, 8)          # single tile, no padding

    lo = max(8, min(128, t_cap))
    best_t, best_waste = None, None
    for t in range(t_cap - t_cap % 8, lo - 1, -8):
        waste = _round_up(n_patches, t) - n_patches
        if best_waste is None or waste < best_waste:
            best_t, best_waste = t, waste
        if waste == 0:
            break
    return best_t


def embeddings_forward(x_ncdhw, params, patch_size):
    """UNETR Embeddings forward (eval mode).

    x_ncdhw: (N, Cin, D, H, W) float32, D/H/W divisible by patch_size.
    params:  w (E, Cin, p, p, p) [PyTorch Conv3d layout], b (E,),
             pos (1, n_patches, E).
    returns: (N, n_patches, E) float32 token embeddings.
    """
    p = patch_size
    N, Cin, D, H, W = x_ncdhw.shape
    E = params["w"].shape[0]
    Dp, Hp, Wp = D // p, H // p, W // p
    n_patches = Dp * Hp * Wp
    Kin = Cin * p * p * p

    # --- patchify (bf16): (N, Cin, D, H, W) -> (N, n_patches, Cin*p^3) -------
    # Contraction-axis flatten order is (cin, kd, kh, kw) to match the PyTorch
    # Conv3d weight layout (E, Cin, kd, kh, kw).  Done once, in bf16, so the
    # unavoidable HBM round-trip is half the size of the f32 version.
    xb = x_ncdhw.astype(jnp.bfloat16)
    xp = xb.reshape(N, Cin, Dp, p, Hp, p, Wp, p)
    xp = jnp.transpose(xp, (0, 2, 4, 6, 1, 3, 5, 7))
    patches = xp.reshape(N, n_patches, Kin)

    # --- weight (bf16, lane-dense) and bias folded into pos (f32) ------------
    w2d = params["w"].reshape(E, Kin).T.astype(jnp.bfloat16)     # (Kin, E)
    pos_b = (params["pos"] + params["b"][None, None, :]).astype(jnp.float32)

    # --- tiling: pad the patch axis to a multiple of tile_p ------------------
    tile_p = _pick_patch_tile(n_patches, Kin, E)
    n_pad = _round_up(n_patches, tile_p)
    if n_pad != n_patches:
        patches = jnp.pad(patches, ((0, 0), (0, n_pad - n_patches), (0, 0)))
        pos_b = jnp.pad(pos_b, ((0, 0), (0, n_pad - n_patches), (0, 0)))
    n_tiles = n_pad // tile_p

    # --- weight residency / VMEM budgeting -----------------------------------
    w_bytes = Kin * E * 2
    if w_bytes > (4 << 20):
        # Big slab (production E/Kin): single-buffer it — the block index never
        # changes, so the second buffer is pure VMEM waste (v7x has 64 MiB).
        w_spec = pl.BlockSpec((Kin, E), lambda t, n: (0, 0),
                              pipeline_mode=pl.Buffered(1))
        w_buffers = 1
    else:
        w_spec = pl.BlockSpec((Kin, E), lambda t, n: (0, 0))
        w_buffers = 2
    blocks_bytes = 2 * (tile_p * Kin * 2 + tile_p * E * 4 + tile_p * E * 4)
    needed = w_bytes * w_buffers + blocks_bytes
    vmem_limit = int(min(100 << 20, max(32 << 20, needed + (4 << 20))))

    # Grid: (patch-tiles, batch).  Batch is the fast axis so the pos block
    # (indexed by the tile only) stays resident across the whole batch sweep.
    grid = (n_tiles, N)

    out = pl.pallas_call(
        _embeddings_kernel,
        out_shape=jax.ShapeDtypeStruct((N, n_pad, E), jnp.float32),
        grid_spec=pltpu.PrefetchScalarGridSpec(
            num_scalar_prefetch=0,
            grid=grid,
            in_specs=[
                pl.BlockSpec((1, tile_p, Kin), lambda t, n: (n, t, 0)),
                w_spec,
                pl.BlockSpec((1, tile_p, E), lambda t, n: (0, t, 0)),
            ],
            out_specs=pl.BlockSpec((1, tile_p, E), lambda t, n: (n, t, 0)),
        ),
        compiler_params=pltpu.CompilerParams(
            dimension_semantics=("parallel", "parallel"),
            vmem_limit_bytes=vmem_limit),
    )(patches, w2d, pos_b)

    if n_pad != n_patches:
        out = out[:, :n_patches, :]

    # TODO(synk): nn.Dropout is identity in eval mode; training-mode stochastic
    # masking (pltpu.prng_* + mask/scale) is intentionally not applied here.
    return out


def _ref_embeddings(x, params, p):
    """Pure-XLA reference using the SAME bf16-quantized operands as the kernel
    (so the comparison checks kernel correctness, not bf16 quantization)."""
    xw = x.astype(jnp.bfloat16).astype(jnp.float32)
    ww = params["w"].astype(jnp.bfloat16).astype(jnp.float32)
    y = lax.conv_general_dilated(
        xw, ww, window_strides=(p, p, p), padding="VALID",
        dimension_numbers=("NCDHW", "OIDHW", "NCDHW"),
        precision=lax.Precision.HIGHEST)
    y = y + params["b"][None, :, None, None, None]
    N, E = y.shape[0], y.shape[1]
    y = y.reshape(N, E, -1).transpose(0, 2, 1)       # flatten(2).transpose(-1,-2)
    return y + params["pos"]


def init_params(key, input_dim, embed_dim, cube_size, patch_size):
    cd, ch, cw = cube_size
    n_patches = (cd * ch * cw) // (patch_size ** 3)
    k1, k2, k3 = jax.random.split(key, 3)
    s = 0.1
    return {
        # PyTorch Conv3d weight: (out_channels, in_channels, kD, kH, kW)
        "w": jax.random.uniform(
            k1, (embed_dim, input_dim, patch_size, patch_size, patch_size),
            jnp.float32, -s, s),
        "b": jax.random.uniform(k2, (embed_dim,), jnp.float32, -s, s),
        # position_embeddings is zero-initialized in PyTorch; use small randoms
        # so the correctness check actually exercises the add.
        "pos": jax.random.uniform(k3, (1, n_patches, embed_dim),
                                  jnp.float32, -s, s),
    }


if __name__ == "__main__":
    key = jax.random.PRNGKey(0)
    kx, kp = jax.random.split(key)

    N, input_dim, embed_dim = 2, 4, 128
    cube_size, patch_size = (16, 16, 16), 4
    n_patches = (16 * 16 * 16) // (patch_size ** 3)   # 64

    x = jax.random.normal(kx, (N, input_dim) + cube_size, jnp.float32)  # NCDHW
    params = init_params(kp, input_dim, embed_dim, cube_size, patch_size)

    y = jax.block_until_ready(embeddings_forward(x, params, patch_size))
    assert y.shape == (N, n_patches, embed_dim), y.shape

    # correctness check against pure-XLA Conv3d patch embedding (same bf16
    # quantization of the operands; f32 accumulation on both sides)
    yr = _ref_embeddings(x, params, patch_size)
    err = float(jnp.max(jnp.abs(y - yr)))
    assert jnp.allclose(y, yr, rtol=2e-3, atol=2e-3), err

    print("KERNEL_OK")
</pallas_src>

<mosaic_0001>
module attributes {stable_mosaic.version = 11 : i64} {
  func.func @_embeddings_kernel(%arg0: i32, %arg1: i32, %arg2: memref<1x64x256xbf16, #tpu.memory_space<vmem>>, %arg3: memref<256x128xbf16, #tpu.memory_space<vmem>>, %arg4: memref<1x64x128xf32, #tpu.memory_space<vmem>>, %arg5: memref<1x64x128xf32, #tpu.memory_space<vmem>>) attributes {dimension_semantics = [#tpu.dimension_semantics<parallel>, #tpu.dimension_semantics<parallel>], iteration_bounds = array<i64: 1, 2>, scalar_prefetch = 0 : i64, scratch_operands = 0 : i64, tpu.core_type = #tpu.core_type<tc>, window_params = [{transform_indices = @transform_0, window_bounds = array<i64: 1, 64, 256>}, {pipeline_mode = #tpu.pipeline_mode<synchronous>, transform_indices = @transform_1, window_bounds = array<i64: 256, 128>}, {transform_indices = @transform_2, window_bounds = array<i64: 1, 64, 128>}, {transform_indices = @transform_3, window_bounds = array<i64: 1, 64, 128>}]} {
    %c0 = arith.constant 0 : index
    %c0_0 = arith.constant 0 : index
    %c0_1 = arith.constant 0 : index
    %0 = vector.load %arg2[%c0, %c0_0, %c0_1] : memref<1x64x256xbf16, #tpu.memory_space<vmem>>, vector<1x64x256xbf16>
    %1 = vector.shape_cast %0 : vector<1x64x256xbf16> to vector<64x256xbf16>
    %c0_2 = arith.constant 0 : index
    %c0_3 = arith.constant 0 : index
    %2 = vector.load %arg3[%c0_2, %c0_3] : memref<256x128xbf16, #tpu.memory_space<vmem>>, vector<256x128xbf16>
    %cst = arith.constant dense<0.000000e+00> : vector<64x128xf32>
    %3 = tpu.matmul %1, %2, %cst {dimension_numbers = #tpu.dot_dimension_numbers<[1], [0], [0], [1], [0, 0, 1, 1], [], []>} : vector<64x256xbf16>, vector<256x128xbf16>, vector<64x128xf32> -> vector<64x128xf32>
    %c0_4 = arith.constant 0 : index
    %c0_5 = arith.constant 0 : index
    %c0_6 = arith.constant 0 : index
    %4 = vector.load %arg4[%c0_4, %c0_5, %c0_6] : memref<1x64x128xf32, #tpu.memory_space<vmem>>, vector<1x64x128xf32>
    %5 = vector.shape_cast %4 : vector<1x64x128xf32> to vector<64x128xf32>
    %6 = arith.addf %3, %5 : vector<64x128xf32>
    %c0_7 = arith.constant 0 : index
    %c0_8 = arith.constant 0 : index
    %c0_9 = arith.constant 0 : index
    %7 = vector.load %arg5[%c0_7, %c0_8, %c0_9] : memref<1x64x128xf32, #tpu.memory_space<vmem>>, vector<1x64x128xf32>
    %8 = vector.shape_cast %7 : vector<1x64x128xf32> to vector<64x128xf32>
    %9 = vector.shape_cast %6 : vector<64x128xf32> to vector<1x64x128xf32>
    tpu.vector_store %arg5[%c0_7, %c0_8, %c0_9], %9 {strides = array<i32>} : memref<1x64x128xf32, #tpu.memory_space<vmem>>, vector<1x64x128xf32>,
    return
  }
  func.func @transform_0(%arg0: i32, %arg1: i32) -> (i32, i32, i32) {
    %c0_i32 = arith.constant 0 : i32
    %c0_i32_0 = arith.constant 0 : i32
    return %arg1, %arg0, %c0_i32 : i32, i32, i32
  }
  func.func @transform_1(%arg0: i32, %arg1: i32) -> (i32, i32) {
    %c0_i32 = arith.constant 0 : i32
    %c0_i32_0 = arith.constant 0 : i32
    %c0_i32_1 = arith.constant 0 : i32
    return %c0_i32, %c0_i32_0 : i32, i32
  }
  func.func @transform_2(%arg0: i32, %arg1: i32) -> (i32, i32, i32) {
    %c0_i32 = arith.constant 0 : i32
    %c0_i32_0 = arith.constant 0 : i32
    %c0_i32_1 = arith.constant 0 : i32
    return %c0_i32, %arg0, %c0_i32_0 : i32, i32, i32
  }
  func.func @transform_3(%arg0: i32, %arg1: i32) -> (i32, i32, i32) {
    %c0_i32 = arith.constant 0 : i32
    %c0_i32_0 = arith.constant 0 : i32
    return %arg1, %arg0, %c0_i32 : i32, i32, i32
  }
}

</mosaic_0001>

<llo_original>
// kernel: tpu_custom_call.1
$region0: #{tpu_custom_call.1}
  #allocation0 [shape = 'u32[]', space=smem, size = 0x4, offset = 0x4, fixed_abs, tag = 'smem constant byte address 0x4 - core index']
  #allocation1 [shape = 'u32[144,128]{1,0:T(1,128)}', space=vmem, size = 0x12000, scoped, tag = 'internal scratch']
  %s0 = inlined_call_operand.hbm [shape: bf16[2,64,256], index: 0, kind: input, shape index: {}]
  %s1 = inlined_call_operand.hbm [shape: bf16[256,128], index: 1, kind: input, shape index: {}]
  %s2 = inlined_call_operand.hbm [shape: f32[1,64,128], index: 2, kind: input, shape index: {}]
  %s3 = inlined_call_operand.hbm [shape: f32[2,64,128], index: 3, kind: output, shape index: {}]
  %s4 = sld [smem:[#allocation0]]
  $region57: #{tpu_custom_call.1} parent=0
    _
  %s6 = ssub.s32 1, %s4
  %s7 = scalar_select 0, %s6, %s4
  $region1: #{tpu_custom_call.1} parent=0
    #allocation2 [shape = 'u8[65536]{0}', space=vmem, size = 0x10000, scoped, tag = 'input window, operand 0']
    #allocation3 [shape = 's32[2]{0}', space=sflag, size = 0x8, scoped, tag = 'scoped memory for tpu_custom_call.1']
    #allocation4 [shape = 's32[2]{0}', space=sflag, size = 0x8, scoped, tag = 'scoped memory for tpu_custom_call.1']
    #allocation5 [shape = 'u8[65536]{0}', space=vmem, size = 0x10000, scoped, tag = 'input window, operand 1, single buffered']
    #allocation6 [shape = 's32[1]{0}', space=sflag, size = 0x4, scoped, tag = 'scoped memory for tpu_custom_call.1']
    #allocation7 [shape = 'u8[32768]{0}', space=vmem, size = 0x8000, scoped, tag = 'input window, operand 2, single buffered']
    #allocation8 [shape = 'u8[65536]{0}', space=vmem, size = 0x10000, scoped, tag = 'output window, operand 0']
    %8 = vsyncpa [#allocation3], 0
    %s9 = scalar_lea.sflag [#allocation3], 1
    %10 = vsyncpa %s9, 0
    %11 = vsyncpa [#allocation6], 0
    %12 = vsyncpa [#allocation4], 0
    %s13 = scalar_lea.sflag [#allocation4], 1
    %14 = vsyncpa %s13, 0
    loop: start=0, step=1, limit=4
    $region2: #{tpu_custom_call.1} parent=1 // loop_pre_header
      _
    $region3: #{tpu_custom_call.1} parent=1 // loop_header
      %s16 = sphi 0, %s20
      %p17 = scmp.ge.s32.totalorder %s16, 4
      %s23 = sphi 0, %s35
      %s24 = sphi 0, %s31
      %s25 = sphi 0, %s23
      %s26 = sphi 0, %s24
      %s27 = sphi 0, %s25
      %s28 = sphi 0, %s26
      %s40 = sphi 0, %s42
      %s43 = sphi 0, %s40
      %s44 = sphi 0, %s43
      %s60 = sphi 0, %s44
      %s64 = sphi 0, %s64
      %s66 = sphi 0, %s64
      %s67 = sphi 0, %s66
      %s81 = sphi 0, %s67
      %s87 = sphi 0, %s89
      %s90 = sphi 0, %s87
      %s91 = sphi 0, %s90
      %s107 = sphi 0, %s91
      %s115 = sphi 0, %s117
      %s118 = sphi 0, %s115
      %s119 = sphi 0, %s118
      %s135 = sphi 0, %s119
    $region4: #{tpu_custom_call.1} parent=1 // loop_header_branch
      %19 = sbr.rel (%p17) target = $region8
    $region5: #{tpu_custom_call.1} parent=1 // loop_body
      %s21 = ssub.s32 %s16, 1
      %s22 = ssub.s32 %s16, 2
      %s29 = sadd.s32 1, %s24
      %p30 = scmp.ge.s32.totalorder %s29, 2
      %s31 = scalar_select %p30, 0, %s29
      %s32 = sadd.s32 1, %s23
      %s33 = scalar_select %p30, %s32, %s23
      %p34 = scmp.ge.s32.totalorder %s33, 1
      %s35 = scalar_select %p34, 0, %s33
      %s36 = ssub.s32 %s24, %s31
      %s37 = ssub.s32 %s23, %s35
      %s38 = sor.u32 %s36, %s37
      %p39 = scmp.eq.s32.totalorder %s38, 0
      %s41 = sadd.s32 %s40, 1
      %s42 = scalar_select %p39, %s40, %s41
      %p45 = pneg %p39
      %p46 = scmp.eq.s32.totalorder %s16, 1
      %p47 = por %p45, %p46
      %p48 = scmp.ne.s32.totalorder %s40, %s43
      %p49 = scmp.eq.s32.totalorder %s16, 0
      %p50 = por %p48, %p49
      %p51 = scmp.ne.s32.totalorder %s40, %s43
      %p52 = scmp.eq.s32.totalorder %s21, 1
      %p53 = por %p51, %p52
      %p54 = scmp.ne.s32.totalorder %s43, %s44
      %p55 = scmp.eq.s32.totalorder %s21, 0
      %p56 = por %p54, %p55
      %p57 = scmp.ne.s32.totalorder %s43, %s44
      %p58 = scmp.eq.s32.totalorder %s22, 1
      %p59 = por %p57, %p58
      %p61 = scmp.ne.s32.totalorder %s44, %s60
      %p62 = scmp.eq.s32.totalorder %s22, 0
      %p63 = por %p61, %p62
      %s65 = sadd.s32 %s64, 1
      %p68 = scmp.eq.s32.totalorder %s16, 1
      %p69 = scmp.ne.s32.totalorder %s64, %s66
      %p70 = scmp.eq.s32.totalorder %s16, 0
      %p71 = por %p69, %p70
      %p72 = scmp.ne.s32.totalorder %s64, %s66
      %p73 = scmp.eq.s32.totalorder %s21, 1
      %p74 = por %p72, %p73
      %p75 = scmp.ne.s32.totalorder %s66, %s67
      %p76 = scmp.eq.s32.totalorder %s21, 0
      %p77 = por %p75, %p76
      %p78 = scmp.ne.s32.totalorder %s66, %s67
      %p79 = scmp.eq.s32.totalorder %s22, 1
      %p80 = por %p78, %p79
      %p82 = scmp.ne.s32.totalorder %s67, %s81
      %p83 = scmp.eq.s32.totalorder %s22, 0
      %p84 = por %p82, %p83
      %s85 = ssub.s32 %s23, %s35
      %p86 = scmp.eq.s32.totalorder %s85, 0
      %s88 = sadd.s32 %s87, 1
      %s89 = scalar_select %p86, %s87, %s88
      %p92 = pneg %p86
      %p93 = scmp.eq.s32.totalorder %s16, 1
      %p94 = por %p92, %p93
      %p95 = scmp.ne.s32.totalorder %s87, %s90
      %p96 = scmp.eq.s32.totalorder %s16, 0
      %p97 = por %p95, %p96
      %p98 = scmp.ne.s32.totalorder %s87, %s90
      %p99 = scmp.eq.s32.totalorder %s21, 1
      %p100 = por %p98, %p99
      %p101 = scmp.ne.s32.totalorder %s90, %s91
      %p102 = scmp.eq.s32.totalorder %s21, 0
      %p103 = por %p101, %p102
      %p104 = scmp.ne.s32.totalorder %s90, %s91
      %p105 = scmp.eq.s32.totalorder %s22, 1
      %p106 = por %p104, %p105
      %p108 = scmp.ne.s32.totalorder %s91, %s107
      %p109 = scmp.eq.s32.totalorder %s22, 0
      %p110 = por %p108, %p109
      %s111 = ssub.s32 %s24, %s31
      %s112 = ssub.s32 %s23, %s35
      %s113 = sor.u32 %s111, %s112
      %p114 = scmp.eq.s32.totalorder %s113, 0
      %s116 = sadd.s32 %s115, 1
      %s117 = scalar_select %p114, %s115, %s116
      %p120 = pneg %p114
      %p121 = scmp.eq.s32.totalorder %s16, 1
      %p122 = por %p120, %p121
      %p123 = scmp.ne.s32.totalorder %s115, %s118
      %p124 = scmp.eq.s32.totalorder %s16, 0
      %p125 = por %p123, %p124
      %p126 = scmp.ne.s32.totalorder %s115, %s118
      %p127 = scmp.eq.s32.totalorder %s21, 1
      %p128 = por %p126, %p127
      %p129 = scmp.ne.s32.totalorder %s118, %s119
      %p130 = scmp.eq.s32.totalorder %s21, 0
      %p131 = por %p129, %p130
      %p132 = scmp.ne.s32.totalorder %s118, %s119
      %p133 = scmp.eq.s32.totalorder %s22, 1
      %p134 = por %p132, %p133
      %p136 = scmp.ne.s32.totalorder %s119, %s135
      %p137 = scmp.eq.s32.totalorder %s22, 0
      %p138 = por %p136, %p137
      %p139 = scmp.le.s32.totalorder 1, %s16
      %p140 = scmp.lt.s32.totalorder %s16, 3
      %p141 = pnand %p139, %p140
      %p142 = pneg %p141
      // Predicated region
      $region9: #{tpu_custom_call.1} parent=5 // pred_check
        _
      $region10: #{tpu_custom_call.1} parent=5 // pred_check_branch
        %144 = sbr.rel (%p141) target = $region12
      $region11: #{tpu_custom_call.1} parent=5 // pred_region
        %s145 = ssub.s32 %s16, 1
        // Predicated region
        $region13: #{tpu_custom_call.1} parent=11 // pred_check
          %p146 = pneg %p77
        $region14: #{tpu_custom_call.1} parent=11 // pred_check_branch
          %148 = sbr.rel (%p146) target = $region16
        $region15: #{tpu_custom_call.1} parent=11 // pred_region
          %s150 = ssub.s32 2048, 2048
          %151 = vsyncadd [#allocation6], %s150
          %s152 = sshll.u32 [#allocation5], 4
          %s153 = int_to_ptr.vmem [resolvable:$true] %s152
          %158 = dma.hbm_to_vmem [thread:$0]  %s1, 2048, %s153, [#allocation6], 64, 64, 4
        $region16: #{tpu_custom_call.1} parent=11 // pred_fallthru
          _
        // Predicated region
        $region17: #{tpu_custom_call.1} parent=11 // pred_check
          %p159 = pneg %p103
        $region18: #{tpu_custom_call.1} parent=11 // pred_check_branch
          %161 = sbr.rel (%p159) target = $region20
        $region19: #{tpu_custom_call.1} parent=11 // pred_region
          %s162 = smul.u32 8, %s25
          %s164 = ssub.s32 1024, 1024
          %165 = vsyncadd [#allocation6], %s164
          %s166 = smul.addr %s162, 128
          %s167 = scalar_lea.hbm %s2, %s166
          %s168 = sshll.u32 [#allocation7], 4
          %s169 = int_to_ptr.vmem [resolvable:$true] %s168
          %174 = dma.hbm_to_vmem [thread:$0]  %s167, 1024, %s169, [#allocation6], 128, 128, 8
        $region20: #{tpu_custom_call.1} parent=11 // pred_fallthru
          _
      $region12: #{tpu_custom_call.1} parent=5 // pred_fallthru
        _
      %p175 = scmp.lt.s32.totalorder %s16, 2
      // Predicated region
      $region21: #{tpu_custom_call.1} parent=5 // pred_check
        %p176 = pneg %p175
      $region22: #{tpu_custom_call.1} parent=5 // pred_check_branch
        %178 = sbr.rel (%p176) target = $region24
      $region23: #{tpu_custom_call.1} parent=5 // pred_region
        // Predicated region
        $region25: #{tpu_custom_call.1} parent=23 // pred_check
          %p179 = pneg %p50
        $region26: #{tpu_custom_call.1} parent=23 // pred_check_branch
          %181 = sbr.rel (%p179) target = $region28
        $region27: #{tpu_custom_call.1} parent=23 // pred_region
          %s182 = sand.u32 %s40, 1
          %s183 = scalar_lea.sflag [#allocation3], %s182
          %s184 = sand.u32 %s40, 1
          %s185 = smul.addr %s184, 64
          %s186 = scalar_lea.vmem [#allocation2], %s185
          %s187 = smul.u32 8, %s23
          %s189 = ssub.s32 1024, 1024
          %190 = vsyncadd %s183, %s189
          %s191 = smul.addr %s187, 2
          %s192 = smul.addr %s24, 16
          %s193 = sadd.s32 %s191, %s192
          %s194 = smul.addr %s193, 64
          %s195 = scalar_lea.hbm %s0, %s194
          %s196 = sshll.u32 %s186, 4
          %s197 = int_to_ptr.vmem [resolvable:$true] %s196
          %202 = dma.hbm_to_vmem [thread:$0]  %s195, 1024, %s197, %s183, 128, 128, 8
        $region28: #{tpu_custom_call.1} parent=23 // pred_fallthru
          _
      $region24: #{tpu_custom_call.1} parent=5 // pred_fallthru
        _
      %p203 = scmp.le.s32.totalorder 1, %s16
      %p204 = scmp.lt.s32.totalorder %s16, 3
      %p205 = pnand %p203, %p204
      %p206 = pneg %p205
      // Predicated region
      $region29: #{tpu_custom_call.1} parent=5 // pred_check
        _
      $region30: #{tpu_custom_call.1} parent=5 // pred_check_branch
        %208 = sbr.rel (%p205) target = $region32
      $region31: #{tpu_custom_call.1} parent=5 // pred_region
        %s209 = ssub.s32 %s16, 1
        %s210 = sand.u32 %s43, 1
        %s211 = scalar_lea.sflag [#allocation3], %s210
        %s212 = sand.u32 %s43, 1
        %s213 = smul.addr %s212, 64
        %s214 = scalar_lea.vmem [#allocation2], %s213
        // Predicated region
        $region33: #{tpu_custom_call.1} parent=31 // pred_check
          %p215 = pneg %p56
        $region34: #{tpu_custom_call.1} parent=31 // pred_check_branch
          %217 = sbr.rel (%p215) target = $region36
        $region35: #{tpu_custom_call.1} parent=31 // pred_region
          %218 = dma.done %s211, 1024
        $region36: #{tpu_custom_call.1} parent=31 // pred_fallthru
          _
        // Predicated region
        $region37: #{tpu_custom_call.1} parent=31 // pred_check
          %p219 = pneg %p77
        $region38: #{tpu_custom_call.1} parent=31 // pred_check_branch
          %221 = sbr.rel (%p219) target = $region40
        $region39: #{tpu_custom_call.1} parent=31 // pred_region
          %222 = dma.done [#allocation6], 2048
        $region40: #{tpu_custom_call.1} parent=31 // pred_fallthru
          _
        // Predicated region
        $region41: #{tpu_custom_call.1} parent=31 // pred_check
          %p223 = pneg %p103
        $region42: #{tpu_custom_call.1} parent=31 // pred_check_branch
          %225 = sbr.rel (%p223) target = $region44
        $region43: #{tpu_custom_call.1} parent=31 // pred_region
          %226 = dma.done [#allocation6], 1024
        $region44: #{tpu_custom_call.1} parent=31 // pred_fallthru
          _
        %s227 = sand.u32 %s43, 1
        %s228 = scalar_lea.sflag [#allocation3], %s227
        %s229 = sand.u32 %s43, 1
        %s230 = smul.addr %s229, 64
        %s231 = scalar_lea.vmem [#allocation2], %s230
        %p232 = pneg %p56
        %p233 = pneg %p53
        %p234 = pneg %p77
        %p235 = pneg %p74
        %p236 = pneg %p103
        %p237 = pneg %p100
        %p238 = pneg %p131
        %p239 = pneg %p128
        %s240 = sand.u32 %s118, 1
        %s241 = scalar_lea.sflag [#allocation4], %s240
        %s242 = sand.u32 %s118, 1
        %s243 = smul.addr %s242, 64
        %s244 = scalar_lea.vmem [#allocation8], %s243
        %s245 = smul.u32 8, %s25
        %s246 = smul.u32 8, %s25
        %s247 = smul.u32 8, %s25
        %v249 = vld [vmem:[%s214] sm:$0xff]
        %v250 = vld [vmem:[%s214 + $0x8] sm:$0xff]
        %v251 = vld [vmem:[%s214 + $0x10] sm:$0xff]
        %v252 = vld [vmem:[%s214 + $0x18] sm:$0xff]
        %v253 = vld [vmem:[%s214 + $0x20] sm:$0xff]
        %v254 = vld [vmem:[%s214 + $0x28] sm:$0xff]
        %v255 = vld [vmem:[%s214 + $0x30] sm:$0xff]
        %v256 = vld [vmem:[%s214 + $0x38] sm:$0xff]
        %v257 = vld [vmem:[#allocation5] sm:$0xf]
        %v258 = vld [vmem:[#allocation5 + $0x4] sm:$0xf]
        %v259 = vld [vmem:[#allocation5 + $0x8] sm:$0xf]
        %v260 = vld [vmem:[#allocation5 + $0xc] sm:$0xf]
        %v261 = vld [vmem:[#allocation5 + $0x10] sm:$0xf]
        %v262 = vld [vmem:[#allocation5 + $0x14] sm:$0xf]
        %v263 = vld [vmem:[#allocation5 + $0x18] sm:$0xf]
        %v264 = vld [vmem:[#allocation5 + $0x1c] sm:$0xf]
        %v265 = vld [vmem:[#allocation5 + $0x20] sm:$0xf]
        %v266 = vld [vmem:[#allocation5 + $0x24] sm:$0xf]
        %v267 = vld [vmem:[#allocation5 + $0x28] sm:$0xf]
        %v268 = vld [vmem:[#allocation5 + $0x2c] sm:$0xf]
        %v269 = vld [vmem:[#allocation5 + $0x30] sm:$0xf]
        %v270 = vld [vmem:[#allocation5 + $0x34] sm:$0xf]
        %v271 = vld [vmem:[#allocation5 + $0x38] sm:$0xf]
        %v272 = vld [vmem:[#allocation5 + $0x3c] sm:$0xf]
        %v273 = vld [vmem:[#allocation5 + $0x40] sm:$0xf]
        %v274 = vld [vmem:[#allocation5 + $0x44] sm:$0xf]
        %v275 = vld [vmem:[#allocation5 + $0x48] sm:$0xf]
        %v276 = vld [vmem:[#allocation5 + $0x4c] sm:$0xf]
        %v277 = vld [vmem:[#allocation5 + $0x50] sm:$0xf]
        %v278 = vld [vmem:[#allocation5 + $0x54] sm:$0xf]
        %v279 = vld [vmem:[#allocation5 + $0x58] sm:$0xf]
        %v280 = vld [vmem:[#allocation5 + $0x5c] sm:$0xf]
        %v281 = vld [vmem:[#allocation5 + $0x60] sm:$0xf]
        %v282 = vld [vmem:[#allocation5 + $0x64] sm:$0xf]
        %v283 = vld [vmem:[#allocation5 + $0x68] sm:$0xf]
        %v284 = vld [vmem:[#allocation5 + $0x6c] sm:$0xf]
        %v285 = vld [vmem:[#allocation5 + $0x70] sm:$0xf]
        %v286 = vld [vmem:[#allocation5 + $0x74] sm:$0xf]
        %v287 = vld [vmem:[#allocation5 + $0x78] sm:$0xf]
        %v288 = vld [vmem:[#allocation5 + $0x7c] sm:$0xf]
        %v289 = vld [vmem:[#allocation7] sm:$0xff]
        %v290 = vld [vmem:[#allocation7 + $0x8] sm:$0xff]
        %v291 = vld [vmem:[#allocation7 + $0x10] sm:$0xff]
        %v292 = vld [vmem:[#allocation7 + $0x18] sm:$0xff]
        %v293 = vld [vmem:[#allocation7 + $0x20] sm:$0xff]
        %v294 = vld [vmem:[#allocation7 + $0x28] sm:$0xff]
        %v295 = vld [vmem:[#allocation7 + $0x30] sm:$0xff]
        %v296 = vld [vmem:[#allocation7 + $0x38] sm:$0xff]
        %v305 = vunpack.c.l.b16 %v249
        %v306 = vunpack.c.h.b16 %v249
        %v307 = vunpack.c.l.b16 %v250
        %v308 = vunpack.c.h.b16 %v250
        %v309 = vunpack.c.l.b16 %v251
        %v310 = vunpack.c.h.b16 %v251
        %v311 = vunpack.c.l.b16 %v252
        %v312 = vunpack.c.h.b16 %v252
        %v313 = vunpack.c.l.b16 %v253
        %v314 = vunpack.c.h.b16 %v253
        %v315 = vunpack.c.l.b16 %v254
        %v316 = vunpack.c.h.b16 %v254
        %v317 = vunpack.c.l.b16 %v255
        %v318 = vunpack.c.h.b16 %v255
        %v319 = vunpack.c.l.b16 %v256
        %v320 = vunpack.c.h.b16 %v256
        %v321 = vpack.c.b16 %v307, %v305
        %v322 = vpack.c.b16 %v308, %v306
        %v323 = vpack.c.b16 %v311, %v309
        %v324 = vpack.c.b16 %v312, %v310
        %v325 = vpack.c.b16 %v315, %v313
        %v326 = vpack.c.b16 %v316, %v314
        %v327 = vpack.c.b16 %v319, %v317
        %v328 = vpack.c.b16 %v320, %v318
        %v369 = vunpack.c.l.b16 %v257
        %v370 = vunpack.c.l.b16 %v258
        %v371 = vunpack.c.l.b16 %v259
        %v372 = vunpack.c.l.b16 %v260
        %v373 = vunpack.c.l.b16 %v261
        %v374 = vunpack.c.l.b16 %v262
        %v375 = vunpack.c.l.b16 %v263
        %v376 = vunpack.c.l.b16 %v264
        %v377 = vunpack.c.l.b16 %v265
        %v378 = vunpack.c.l.b16 %v266
        %v379 = vunpack.c.l.b16 %v267
        %v380 = vunpack.c.l.b16 %v268
        %v381 = vunpack.c.l.b16 %v269
        %v382 = vunpack.c.l.b16 %v270
        %v383 = vunpack.c.l.b16 %v271
        %v384 = vunpack.c.l.b16 %v272
        %v385 = vunpack.c.l.b16 %v273
        %v386 = vunpack.c.l.b16 %v274
        %v387 = vunpack.c.l.b16 %v275
        %v388 = vunpack.c.l.b16 %v276
        %v389 = vunpack.c.l.b16 %v277
        %v390 = vunpack.c.l.b16 %v278
        %v391 = vunpack.c.l.b16 %v279
        %v392 = vunpack.c.l.b16 %v280
        %v393 = vunpack.c.l.b16 %v281
        %v394 = vunpack.c.l.b16 %v282
        %v395 = vunpack.c.l.b16 %v283
        %v396 = vunpack.c.l.b16 %v284
        %v397 = vunpack.c.l.b16 %v285
        %v398 = vunpack.c.l.b16 %v286
        %v399 = vunpack.c.l.b16 %v287
        %v400 = vunpack.c.l.b16 %v288
        %v401 = vpack.c.b16 %v370, %v369
        %v402 = vpack.c.b16 %v372, %v371
        %v403 = vpack.c.b16 %v374, %v373
        %v404 = vpack.c.b16 %v376, %v375
        %v405 = vpack.c.b16 %v378, %v377
        %v406 = vpack.c.b16 %v380, %v379
        %v407 = vpack.c.b16 %v382, %v381
        %v408 = vpack.c.b16 %v384, %v383
        %v409 = vpack.c.b16 %v386, %v385
        %v410 = vpack.c.b16 %v388, %v387
        %v411 = vpack.c.b16 %v390, %v389
        %v412 = vpack.c.b16 %v392, %v391
        %v413 = vpack.c.b16 %v394, %v393
        %v414 = vpack.c.b16 %v396, %v395
        %v415 = vpack.c.b16 %v398, %v397
        %v416 = vpack.c.b16 %v400, %v399
        %433 = vmatprep.subr.bf16.mxu0 0
        %434 = vmatpush1.bf16.msra.mxu0 %v408
        %435 = vmatprep.subr.bf16.mxu0 0
        %436 = vmatpush1.bf16.msra.mxu0 %v407
        %437 = vmatprep.subr.bf16.mxu0 0
        %438 = vmatpush1.bf16.msra.mxu0 %v406
        %439 = vmatprep.subr.bf16.mxu0 0
        %440 = vmatpush1.bf16.msra.mxu0 %v405
        %441 = vmatprep.subr.bf16.mxu0 0
        %442 = vmatpush1.bf16.msra.mxu0 %v404
        %443 = vmatprep.subr.bf16.mxu0 0
        %444 = vmatpush1.bf16.msra.mxu0 %v403
        %445 = vmatprep.subr.bf16.mxu0 0
        %446 = vmatpush1.bf16.msra.mxu0 %v402
        %447 = vmatprep.subr.bf16.mxu0 0
        %448 = vmatpush1.bf16.msra.mxu0 %v401
        %449 = vmatprep.subr.bf16.mxu0 0
        %450 = vmatpush2.bf16.msra.mxu0 %v416
        %451 = vmatprep.subr.bf16.mxu0 0
        %452 = vmatpush2.bf16.msra.mxu0 %v415
        %453 = vmatprep.subr.bf16.mxu0 0
        %454 = vmatpush2.bf16.msra.mxu0 %v414
        %455 = vmatprep.subr.bf16.mxu0 0
        %456 = vmatpush2.bf16.msra.mxu0 %v413
        %457 = vmatprep.subr.bf16.mxu0 0
        %458 = vmatpush2.bf16.msra.mxu0 %v412
        %459 = vmatprep.subr.bf16.mxu0 0
        %460 = vmatpush2.bf16.msra.mxu0 %v411
        %461 = vmatprep.subr.bf16.mxu0 0
        %462 = vmatpush2.bf16.msra.mxu0 %v410
        %463 = vmatprep.subr.bf16.mxu0 0
        %464 = vmatpush2.bf16.msra.mxu0 %v409
        %465 = vmatprep.mubr.bf16.mxu0 %v322
        %466 = vmatmul.mubr.bf16.gmra.mxu0 %v321
        %v467 = vpop.f32.mrf.mxu0
        %v468 = vadd.f32 %v289, %v467
        %v469 = vpop.f32.mrf.mxu0
        %v470 = vpop.f32.mrf.mxu0
        %v471 = vadd.f32 %v290, %v470
        %v472 = vpop.f32.mrf.mxu0
        %473 = vmatprep.mubr.bf16.mxu0 %v324
        %474 = vmatmul.mubr.bf16.gmra.mxu0 %v323
        %v475 = vpop.f32.mrf.mxu0
        %v476 = vadd.f32 %v291, %v475
        %v477 = vpop.f32.mrf.mxu0
        %v478 = vpop.f32.mrf.mxu0
        %v479 = vadd.f32 %v292, %v478
        %v480 = vpop.f32.mrf.mxu0
        %481 = vmatprep.mubr.bf16.mxu0 %v326
        %482 = vmatmul.mubr.bf16.gmra.mxu0 %v325
        %v483 = vpop.f32.mrf.mxu0
        %v484 = vadd.f32 %v293, %v483
        %v485 = vpop.f32.mrf.mxu0
        %v486 = vpop.f32.mrf.mxu0
        %v487 = vadd.f32 %v294, %v486
        %v488 = vpop.f32.mrf.mxu0
        %489 = vmatprep.mubr.bf16.mxu0 %v328
        %490 = vmatmul.mubr.bf16.gmra.mxu0 %v327
        %v491 = vpop.f32.mrf.mxu0
        %v492 = vadd.f32 %v295, %v491
        %v493 = vpop.f32.mrf.mxu0
        %v494 = vpop.f32.mrf.mxu0
        %v495 = vadd.f32 %v296, %v494
        %v496 = vpop.f32.mrf.mxu0
        %497 = vdwg.mxu0
        %498 = vst [vmem:[%s244] sm:$0xff] %v468
        %499 = vst [vmem:[%s244 + $0x8] sm:$0xff] %v471
        %500 = vst [vmem:[%s244 + $0x10] sm:$0xff] %v476
        %501 = vst [vmem:[%s244 + $0x18] sm:$0xff] %v479
        %502 = vst [vmem:[%s244 + $0x20] sm:$0xff] %v484
        %503 = vst [vmem:[%s244 + $0x28] sm:$0xff] %v487
        %504 = vst [vmem:[%s244 + $0x30] sm:$0xff] %v492
        %505 = vst [vmem:[%s244 + $0x38] sm:$0xff] %v495
        %s506 = sand.u32 %s118, 1
        %s507 = scalar_lea.sflag [#allocation4], %s506
        %s508 = sand.u32 %s118, 1
        %s509 = smul.addr %s508, 64
        %s510 = scalar_lea.vmem [#allocation8], %s509
        // Predicated region
        $region45: #{tpu_custom_call.1} parent=31 // pred_check
          %p511 = pneg %p128
        $region46: #{tpu_custom_call.1} parent=31 // pred_check_branch
          %513 = sbr.rel (%p511) target = $region48
        $region47: #{tpu_custom_call.1} parent=31 // pred_region
          %s514 = smul.u32 8, %s25
          %s516 = ssub.s32 1024, 1024
          %517 = vsyncadd %s507, %s516
          %s518 = smul.addr %s26, 8
          %s519 = sadd.s32 %s514, %s518
          %s520 = smul.addr %s519, 128
          %s521 = scalar_lea.hbm %s3, %s520
          %s522 = sshll.u32 %s510, 4
          %s523 = int_to_ptr.vmem [resolvable:$true] %s522
          %528 = dma.vmem_to_hbm [thread:$0]  %s523, 1024, %s521, %s507, 128, 128, 8
        $region48: #{tpu_custom_call.1} parent=31 // pred_fallthru
          _
      $region32: #{tpu_custom_call.1} parent=5 // pred_fallthru
        _
      %p529 = scmp.le.s32.totalorder 2, %s16
      // Predicated region
      $region49: #{tpu_custom_call.1} parent=5 // pred_check
        %p530 = pneg %p529
      $region50: #{tpu_custom_call.1} parent=5 // pred_check_branch
        %532 = sbr.rel (%p530) target = $region52
      $region51: #{tpu_custom_call.1} parent=5 // pred_region
        %s533 = ssub.s32 %s16, 2
        // Predicated region
        $region53: #{tpu_custom_call.1} parent=51 // pred_check
          %p534 = pneg %p134
        $region54: #{tpu_custom_call.1} parent=51 // pred_check_branch
          %536 = sbr.rel (%p534) target = $region56
        $region55: #{tpu_custom_call.1} parent=51 // pred_region
          %s537 = sand.u32 %s119, 1
          %s538 = scalar_lea.sflag [#allocation4], %s537
          %s539 = sand.u32 %s119, 1
          %s540 = smul.addr %s539, 64
          %s541 = scalar_lea.vmem [#allocation8], %s540
          %542 = dma.done %s538, 1024
        $region56: #{tpu_custom_call.1} parent=51 // pred_fallthru
          _
      $region52: #{tpu_custom_call.1} parent=5 // pred_fallthru
        _
    $region6: #{tpu_custom_call.1} parent=1 // loop_footer
      %s20 = sadd.s32 1, %s16
    $region7: #{tpu_custom_call.1} parent=1 // loop_footer_branch
      %15 = sbr.rel target = $region3
    $region8: #{tpu_custom_call.1} parent=1 // loop_exit
      _
    %543 = vsyncpa [#allocation3], 1
    %s544 = scalar_lea.sflag [#allocation3], 1
    %545 = vsyncpa %s544, 1
    %546 = vsyncpa [#allocation6], 1
    %547 = vsyncpa [#allocation4], 1
    %s548 = scalar_lea.sflag [#allocation4], 1
    %549 = vsyncpa %s548, 1

</llo_original>
